<compile_context>
chip_gen: v6e
topology: v6e:2x2x1
jax: 0.10.0
libtpu: 0.0.40
codegen_flags: <defaults>
</compile_context>

<pallas_src>
import math

import jax
import jax.numpy as jnp
from jax import lax
from jax.experimental import pallas as pl
from jax.experimental.pallas import tpu as pltpu

NDIM = 3
G = 8  # timestep group = sublane depth of one vreg


def _round_up(x, m):
    return (x + m - 1) // m * m


def gated_ema_kernel(x_ref, ktri_ref, qp_ref, wqr_ref, omega_ref, o_ref, h_ref):
    # x_ref/o_ref: (1, TS, TD)
    # ktri_ref:   (G*G, TD)     Ktri[l*G + j] = (j >= l) * sum_n w_n q_n^l
    # qp_ref:     (NDIM*G, TD)  qp[n*G + j]   = q_n^(j+1)
    # wqr_ref:    (NDIM*G, TD)  wqr[n*G + m]  = w_n * q_n^(G-1-m)
    # omega_ref:  (1, TD)
    # h_ref: VMEM scratch (NDIM, TD) f32 — recurrence state carried across S-chunks.
    si = pl.program_id(2)

    @pl.when(si == 0)
    def _():
        h_ref[...] = jnp.zeros_like(h_ref)

    ts = x_ref.shape[1]
    n_groups = ts // G
    omega = omega_ref[...]  # (1, TD)

    def group(g, carry):
        base = pl.multiple_of(g * G, G)
        xg = x_ref[0, pl.ds(base, G), :].astype(jnp.float32)          # (G, TD)
        h = h_ref[...]                                                 # (NDIM, TD)

        # Carry from previous-group state: ema_j += sum_n q_n^(j+1) * h_prev[n].
        ema = qp_ref[pl.ds(0, G), :] * h[0:1, :]
        for n in range(1, NDIM):
            ema += qp_ref[pl.ds(n * G, G), :] * h[n:n + 1, :]

        # Causal in-group convolution: ema_j += sum_{l<=j} K[l] * x[j-l].
        # Triangular masking is folded into Ktri, so the wrapped rows of the
        # sublane roll are multiplied by zero taps (no jnp.where needed).
        ema += ktri_ref[pl.ds(0, G), :] * xg                           # lag 0
        for l in range(1, G):
            rolled = pltpu.roll(xg, shift=l, axis=0)                   # rolled[j] = xg[j-l]
            ema += ktri_ref[pl.ds(l * G, G), :] * rolled

        # State update: h_n <- q_n^G * h_n + sum_m w_n q_n^(G-1-m) * x[m].
        for n in range(NDIM):
            tail = jnp.sum(wqr_ref[pl.ds(n * G, G), :] * xg, axis=0, keepdims=True)
            h_ref[pl.ds(n, 1), :] = (
                qp_ref[pl.ds(n * G + G - 1, 1), :] * h[n:n + 1, :] + tail)

        # Fused silu gate in f32; one dense (8, TD) store per group.
        # TODO(synk): on v6e swap to exp + pl.reciprocal(approx=True) if the
        # logistic lowers to a VPU divide (kept exact here for bitwise safety).
        z = ema + xg * omega
        o_ref[0, pl.ds(base, G), :] = (z * jax.nn.sigmoid(z)).astype(o_ref.dtype)
        return carry

    lax.fori_loop(0, n_groups, group, 0)


def gated_ema(x, delta, alpha, beta, gamma, omega, seq_chunk=None):
    """x: (B, S, D); delta/alpha/beta/gamma: (NDIM, D); omega: (1, D)."""
    B, S, D = x.shape
    out_dtype = x.dtype
    scale = math.sqrt(1.0 / NDIM)
    f32 = jnp.float32

    # ---- hoisted coefficient math (tiny (·, D) tables, computed once) ----
    p = jax.nn.sigmoid(delta.astype(f32))                        # (N, D)
    q = 1.0 - p * jax.nn.sigmoid(alpha.astype(f32))              # (N, D), in (0,1)
    w = p * beta.astype(f32) * gamma.astype(f32) * scale         # (N, D)

    lags = jnp.arange(G, dtype=f32)
    qpow = jnp.exp(lags[None, :, None] * jnp.log(q)[:, None, :])  # (N, G, D): q^l
    k = jnp.einsum('nld,nd->ld', qpow, w)                         # (G, D) tap table
    tri = (jnp.arange(G)[None, :] >= jnp.arange(G)[:, None]).astype(f32)   # tri[l, j]
    ktri = (tri[:, :, None] * k[:, None, :]).reshape(G * G, D)    # (G*G, D)
    qp = (q[:, None, :] * qpow).reshape(NDIM * G, D)              # q^(l+1)
    wqr = (w[:, None, :] * qpow[:, ::-1, :]).reshape(NDIM * G, D)  # w * q^(G-1-l)
    omega32 = omega.astype(f32).reshape(1, D)

    # ---- padding / tiling: lane-dense D, S multiple of the chunk ----
    D_pad = _round_up(D, 128)
    if seq_chunk is not None:
        TS = _round_up(seq_chunk, G)
    elif S <= 1024:
        TS = _round_up(S, G)
    else:
        TS = 512
    S_pad = _round_up(S, TS)

    TD = math.gcd(D_pad, 512)
    # v7x: keep the parallel grid extent >= 2 so both TensorCores get work.
    while B * (D_pad // TD) < 2 and TD > 128:
        TD //= 2

    x_p = jnp.pad(x, ((0, 0), (0, S_pad - S), (0, D_pad - D)))
    pad_d = lambda a: jnp.pad(a, ((0, 0), (0, D_pad - D)))
    ktri_p, qp_p, wqr_p, omega_p = pad_d(ktri), pad_d(qp), pad_d(wqr), pad_d(omega32)

    grid = (B, D_pad // TD, S_pad // TS)

    cost = pl.CostEstimate(
        flops=(2 * G + 4 * NDIM + 8) * B * S_pad * D_pad,
        transcendentals=B * S_pad * D_pad,                 # sigmoid in the silu gate
        bytes_accessed=2 * x.dtype.itemsize * B * S_pad * D_pad,
    )

    out = pl.pallas_call(
        gated_ema_kernel,
        out_shape=jax.ShapeDtypeStruct((B, S_pad, D_pad), out_dtype),
        grid=grid,
        in_specs=[
            pl.BlockSpec((1, TS, TD), lambda b, di, si: (b, si, di)),
            pl.BlockSpec((G * G, TD), lambda b, di, si: (0, di)),
            pl.BlockSpec((NDIM * G, TD), lambda b, di, si: (0, di)),
            pl.BlockSpec((NDIM * G, TD), lambda b, di, si: (0, di)),
            pl.BlockSpec((1, TD), lambda b, di, si: (0, di)),
        ],
        out_specs=pl.BlockSpec((1, TS, TD), lambda b, di, si: (b, si, di)),
        scratch_shapes=[pltpu.VMEM((NDIM, TD), jnp.float32)],
        compiler_params=pltpu.CompilerParams(
            dimension_semantics=("parallel", "parallel", "arbitrary"),
            vmem_limit_bytes=32 * 1024 * 1024,
        ),
        cost_estimate=cost,
    )(x_p, ktri_p, qp_p, wqr_p, omega_p)

    return out[:, :S, :D]


def gated_ema_ref(x, delta, alpha, beta, gamma, omega):
    """Pure-JAX reference mirroring the PyTorch math (Toeplitz causal conv)."""
    B, S, D = x.shape
    scale = math.sqrt(1.0 / NDIM)
    p = jax.nn.sigmoid(delta)                                    # (N, D)
    q = 1.0 - p * jax.nn.sigmoid(alpha)                          # (N, D)
    t = jnp.arange(S, dtype=jnp.float32)[:, None, None]          # (S, 1, 1)
    kern = (p * beta)[None] * jnp.exp(t * jnp.log(q)[None])      # (S, N, D)
    k = jnp.einsum('snd,nd->sd', kern, gamma * scale)            # (S, D)
    idx = jnp.arange(S)
    lag = idx[:, None] - idx[None, :]                            # (S, S)
    T = jnp.where((lag >= 0)[:, :, None],
                  k[jnp.clip(lag, 0, S - 1), :], 0.0)            # (S, S, D)
    ema = jnp.einsum('tsd,bsd->btd', T, x)
    z = ema + x * omega[0][None, None, :]
    return z * jax.nn.sigmoid(z)


if __name__ == "__main__":
    key = jax.random.PRNGKey(0)
    k_x, k_d, k_a, k_b, k_g, k_o, k_x2 = jax.random.split(key, 7)

    B, S, D = 2, 8, 32
    x = jax.random.normal(k_x, (B, S, D), dtype=jnp.float32)

    # Deterministic parameter init matching the PyTorch reset_parameters()
    # distributions, stored as (NDIM, D) / (1, D).
    delta = 0.2 * jax.random.normal(k_d, (NDIM, D), dtype=jnp.float32)
    alpha = 0.2 * jax.random.normal(k_a, (NDIM, D), dtype=jnp.float32)
    val = jnp.array([1.0, -1.0, 1.0], dtype=jnp.float32)[:, None]   # index_fill on odd rows
    beta = 0.02 * jax.random.normal(k_b, (NDIM, D), dtype=jnp.float32) + val
    gamma = jax.random.normal(k_g, (NDIM, D), dtype=jnp.float32)
    omega = jax.random.normal(k_o, (1, D), dtype=jnp.float32)

    y = jax.block_until_ready(gated_ema(x, delta, alpha, beta, gamma, omega))
    y_ref = gated_ema_ref(x, delta, alpha, beta, gamma, omega)
    if not jnp.allclose(y, y_ref, atol=1e-4, rtol=1e-4):
        raise AssertionError("Pallas GatedEMA does not match JAX reference (S=8)")

    # Second shape: non-multiple-of-8 seq length + explicit small chunk to also
    # exercise S/D padding, the multi-group in-chunk scan and the cross-chunk
    # state carry (multiple steps along the innermost grid axis).
    S2 = 19
    x2 = jax.random.normal(k_x2, (B, S2, D), dtype=jnp.float32)
    y2 = jax.block_until_ready(
        gated_ema(x2, delta, alpha, beta, gamma, omega, seq_chunk=8))
    y2_ref = gated_ema_ref(x2, delta, alpha, beta, gamma, omega)
    if not jnp.allclose(y2, y2_ref, atol=1e-4, rtol=1e-4):
        raise AssertionError("Pallas GatedEMA does not match JAX reference (S=19)")

    print("KERNEL_OK")
</pallas_src>

<mosaic_0001>
module attributes {stable_mosaic.version = 11 : i64} {
  func.func @gated_ema_kernel(%arg0: i32, %arg1: i32, %arg2: i32, %arg3: memref<1x8x128xf32, #tpu.memory_space<vmem>>, %arg4: memref<64x128xf32, #tpu.memory_space<vmem>>, %arg5: memref<24x128xf32, #tpu.memory_space<vmem>>, %arg6: memref<24x128xf32, #tpu.memory_space<vmem>>, %arg7: memref<1x128xf32, #tpu.memory_space<vmem>>, %arg8: memref<1x8x128xf32, #tpu.memory_space<vmem>>, %arg9: memref<3x128xf32, #tpu.memory_space<vmem>>) attributes {dimension_semantics = [#tpu.dimension_semantics<parallel>, #tpu.dimension_semantics<parallel>, #tpu.dimension_semantics<arbitrary>], iteration_bounds = array<i64: 2, 1, 1>, scalar_prefetch = 0 : i64, scratch_operands = 1 : i64, tpu.core_type = #tpu.core_type<tc>, window_params = [{transform_indices = @transform_0, window_bounds = array<i64: 1, 8, 128>}, {transform_indices = @transform_1, window_bounds = array<i64: 64, 128>}, {transform_indices = @transform_2, window_bounds = array<i64: 24, 128>}, {transform_indices = @transform_3, window_bounds = array<i64: 24, 128>}, {transform_indices = @transform_4, window_bounds = array<i64: 1, 128>}, {transform_indices = @transform_5, window_bounds = array<i64: 1, 8, 128>}]} {
    %c0_i32 = arith.constant 0 : i32
    %0 = arith.cmpi eq, %arg2, %c0_i32 : i32
    %1 = arith.extui %0 : i1 to i32
    %c0_i32_0 = arith.constant 0 : i32
    %2 = arith.cmpi ne, %1, %c0_i32_0 : i32
    scf.if %2 {
      %cst_41 = arith.constant 0.000000e+00 : f32
      %95 = vector.broadcast %cst_41 : f32 to vector<3x128xf32>
      %c0_42 = arith.constant 0 : index
      %c0_43 = arith.constant 0 : index
      %96 = vector.load %arg9[%c0_42, %c0_43] : memref<3x128xf32, #tpu.memory_space<vmem>>, vector<3x128xf32>
      tpu.vector_store %arg9[%c0_42, %c0_43], %95 {strides = array<i32>} : memref<3x128xf32, #tpu.memory_space<vmem>>, vector<3x128xf32>,
    } else {
    }
    %c0 = arith.constant 0 : index
    %c0_1 = arith.constant 0 : index
    %3 = vector.load %arg7[%c0, %c0_1] : memref<1x128xf32, #tpu.memory_space<vmem>>, vector<1x128xf32>
    %c0_i32_2 = arith.constant 0 : i32
    %c8_i32 = arith.constant 8 : i32
    %4 = arith.muli %c0_i32_2, %c8_i32 : i32
    %5 = tpu.assume_multiple %4, 8 : i32
    %c0_3 = arith.constant 0 : index
    %6 = arith.index_cast %5 : i32 to index
    %c0_4 = arith.constant 0 : index
    %7 = vector.load %arg3[%c0_3, %6, %c0_4] : memref<1x8x128xf32, #tpu.memory_space<vmem>>, vector<1x8x128xf32>
    %8 = vector.shape_cast %7 : vector<1x8x128xf32> to vector<8x128xf32>
    %c0_5 = arith.constant 0 : index
    %c0_6 = arith.constant 0 : index
    %9 = vector.load %arg9[%c0_5, %c0_6] : memref<3x128xf32, #tpu.memory_space<vmem>>, vector<3x128xf32>
    %c0_7 = arith.constant 0 : index
    %c0_8 = arith.constant 0 : index
    %10 = vector.load %arg5[%c0_7, %c0_8] : memref<24x128xf32, #tpu.memory_space<vmem>>, vector<8x128xf32>
    %11 = vector.extract_strided_slice %9 {offsets = [0, 0], sizes = [1, 128], strides = [1, 1]} : vector<3x128xf32> to vector<1x128xf32>
    %12 = vector.broadcast %11 : vector<1x128xf32> to vector<8x128xf32>
    %13 = arith.mulf %10, %12 : vector<8x128xf32>
    %c8 = arith.constant 8 : index
    %c0_9 = arith.constant 0 : index
    %14 = vector.load %arg5[%c8, %c0_9] : memref<24x128xf32, #tpu.memory_space<vmem>>, vector<8x128xf32>
    %15 = vector.extract_strided_slice %9 {offsets = [1, 0], sizes = [1, 128], strides = [1, 1]} : vector<3x128xf32> to vector<1x128xf32>
    %16 = vector.broadcast %15 : vector<1x128xf32> to vector<8x128xf32>
    %17 = arith.mulf %14, %16 : vector<8x128xf32>
    %18 = arith.addf %13, %17 : vector<8x128xf32>
    %c16 = arith.constant 16 : index
    %c0_10 = arith.constant 0 : index
    %19 = vector.load %arg5[%c16, %c0_10] : memref<24x128xf32, #tpu.memory_space<vmem>>, vector<8x128xf32>
    %20 = vector.extract_strided_slice %9 {offsets = [2, 0], sizes = [1, 128], strides = [1, 1]} : vector<3x128xf32> to vector<1x128xf32>
    %21 = vector.broadcast %20 : vector<1x128xf32> to vector<8x128xf32>
    %22 = arith.mulf %19, %21 : vector<8x128xf32>
    %23 = arith.addf %18, %22 : vector<8x128xf32>
    %c0_11 = arith.constant 0 : index
    %c0_12 = arith.constant 0 : index
    %24 = vector.load %arg4[%c0_11, %c0_12] : memref<64x128xf32, #tpu.memory_space<vmem>>, vector<8x128xf32>
    %25 = arith.mulf %24, %8 : vector<8x128xf32>
    %26 = arith.addf %23, %25 : vector<8x128xf32>
    %c1_i32 = arith.constant 1 : i32
    %27 = tpu.dynamic_rotate %8 by %c1_i32 dim 0 : vector<8x128xf32>, i32 -> vector<8x128xf32>
    %c8_13 = arith.constant 8 : index
    %c0_14 = arith.constant 0 : index
    %28 = vector.load %arg4[%c8_13, %c0_14] : memref<64x128xf32, #tpu.memory_space<vmem>>, vector<8x128xf32>
    %29 = arith.mulf %28, %27 : vector<8x128xf32>
    %30 = arith.addf %26, %29 : vector<8x128xf32>
    %c2_i32 = arith.constant 2 : i32
    %31 = tpu.dynamic_rotate %8 by %c2_i32 dim 0 : vector<8x128xf32>, i32 -> vector<8x128xf32>
    %c16_15 = arith.constant 16 : index
    %c0_16 = arith.constant 0 : index
    %32 = vector.load %arg4[%c16_15, %c0_16] : memref<64x128xf32, #tpu.memory_space<vmem>>, vector<8x128xf32>
    %33 = arith.mulf %32, %31 : vector<8x128xf32>
    %34 = arith.addf %30, %33 : vector<8x128xf32>
    %c3_i32 = arith.constant 3 : i32
    %35 = tpu.dynamic_rotate %8 by %c3_i32 dim 0 : vector<8x128xf32>, i32 -> vector<8x128xf32>
    %c24 = arith.constant 24 : index
    %c0_17 = arith.constant 0 : index
    %36 = vector.load %arg4[%c24, %c0_17] : memref<64x128xf32, #tpu.memory_space<vmem>>, vector<8x128xf32>
    %37 = arith.mulf %36, %35 : vector<8x128xf32>
    %38 = arith.addf %34, %37 : vector<8x128xf32>
    %c4_i32 = arith.constant 4 : i32
    %39 = tpu.dynamic_rotate %8 by %c4_i32 dim 0 : vector<8x128xf32>, i32 -> vector<8x128xf32>
    %c32 = arith.constant 32 : index
    %c0_18 = arith.constant 0 : index
    %40 = vector.load %arg4[%c32, %c0_18] : memref<64x128xf32, #tpu.memory_space<vmem>>, vector<8x128xf32>
    %41 = arith.mulf %40, %39 : vector<8x128xf32>
    %42 = arith.addf %38, %41 : vector<8x128xf32>
    %c5_i32 = arith.constant 5 : i32
    %43 = tpu.dynamic_rotate %8 by %c5_i32 dim 0 : vector<8x128xf32>, i32 -> vector<8x128xf32>
    %c40 = arith.constant 40 : index
    %c0_19 = arith.constant 0 : index
    %44 = vector.load %arg4[%c40, %c0_19] : memref<64x128xf32, #tpu.memory_space<vmem>>, vector<8x128xf32>
    %45 = arith.mulf %44, %43 : vector<8x128xf32>
    %46 = arith.addf %42, %45 : vector<8x128xf32>
    %c6_i32 = arith.constant 6 : i32
    %47 = tpu.dynamic_rotate %8 by %c6_i32 dim 0 : vector<8x128xf32>, i32 -> vector<8x128xf32>
    %c48 = arith.constant 48 : index
    %c0_20 = arith.constant 0 : index
    %48 = vector.load %arg4[%c48, %c0_20] : memref<64x128xf32, #tpu.memory_space<vmem>>, vector<8x128xf32>
    %49 = arith.mulf %48, %47 : vector<8x128xf32>
    %50 = arith.addf %46, %49 : vector<8x128xf32>
    %c7_i32 = arith.constant 7 : i32
    %51 = tpu.dynamic_rotate %8 by %c7_i32 dim 0 : vector<8x128xf32>, i32 -> vector<8x128xf32>
    %c56 = arith.constant 56 : index
    %c0_21 = arith.constant 0 : index
    %52 = vector.load %arg4[%c56, %c0_21] : memref<64x128xf32, #tpu.memory_space<vmem>>, vector<8x128xf32>
    %53 = arith.mulf %52, %51 : vector<8x128xf32>
    %54 = arith.addf %50, %53 : vector<8x128xf32>
    %c0_22 = arith.constant 0 : index
    %c0_23 = arith.constant 0 : index
    %55 = vector.load %arg6[%c0_22, %c0_23] : memref<24x128xf32, #tpu.memory_space<vmem>>, vector<8x128xf32>
    %56 = arith.mulf %55, %8 : vector<8x128xf32>
    %cst = arith.constant dense<0.000000e+00> : vector<128xf32>
    %57 = vector.multi_reduction <add>, %56, %cst [0] : vector<8x128xf32> to vector<128xf32>
    %58 = vector.shape_cast %57 : vector<128xf32> to vector<1x128xf32>
    %c7 = arith.constant 7 : index
    %c0_24 = arith.constant 0 : index
    %59 = vector.load %arg5[%c7, %c0_24] : memref<24x128xf32, #tpu.memory_space<vmem>>, vector<1x128xf32>
    %60 = vector.extract_strided_slice %9 {offsets = [0, 0], sizes = [1, 128], strides = [1, 1]} : vector<3x128xf32> to vector<1x128xf32>
    %61 = arith.mulf %59, %60 : vector<1x128xf32>
    %62 = arith.addf %61, %58 : vector<1x128xf32>
    %c0_25 = arith.constant 0 : index
    %c0_26 = arith.constant 0 : index
    %63 = vector.load %arg9[%c0_25, %c0_26] : memref<3x128xf32, #tpu.memory_space<vmem>>, vector<1x128xf32>
    tpu.vector_store %arg9[%c0_25, %c0_26], %62 {strides = array<i32>} : memref<3x128xf32, #tpu.memory_space<vmem>>, vector<1x128xf32>,
    %c8_27 = arith.constant 8 : index
    %c0_28 = arith.constant 0 : index
    %64 = vector.load %arg6[%c8_27, %c0_28] : memref<24x128xf32, #tpu.memory_space<vmem>>, vector<8x128xf32>
    %65 = arith.mulf %64, %8 : vector<8x128xf32>
    %cst_29 = arith.constant dense<0.000000e+00> : vector<128xf32>
    %66 = vector.multi_reduction <add>, %65, %cst_29 [0] : vector<8x128xf32> to vector<128xf32>
    %67 = vector.shape_cast %66 : vector<128xf32> to vector<1x128xf32>
    %c15 = arith.constant 15 : index
    %c0_30 = arith.constant 0 : index
    %68 = vector.load %arg5[%c15, %c0_30] : memref<24x128xf32, #tpu.memory_space<vmem>>, vector<1x128xf32>
    %69 = vector.extract_strided_slice %9 {offsets = [1, 0], sizes = [1, 128], strides = [1, 1]} : vector<3x128xf32> to vector<1x128xf32>
    %70 = arith.mulf %68, %69 : vector<1x128xf32>
    %71 = arith.addf %70, %67 : vector<1x128xf32>
    %c1 = arith.constant 1 : index
    %c0_31 = arith.constant 0 : index
    %72 = vector.load %arg9[%c1, %c0_31] : memref<3x128xf32, #tpu.memory_space<vmem>>, vector<1x128xf32>
    tpu.vector_store %arg9[%c1, %c0_31], %71 {strides = array<i32>} : memref<3x128xf32, #tpu.memory_space<vmem>>, vector<1x128xf32>,
    %c16_32 = arith.constant 16 : index
    %c0_33 = arith.constant 0 : index
    %73 = vector.load %arg6[%c16_32, %c0_33] : memref<24x128xf32, #tpu.memory_space<vmem>>, vector<8x128xf32>
    %74 = arith.mulf %73, %8 : vector<8x128xf32>
    %cst_34 = arith.constant dense<0.000000e+00> : vector<128xf32>
    %75 = vector.multi_reduction <add>, %74, %cst_34 [0] : vector<8x128xf32> to vector<128xf32>
    %76 = vector.shape_cast %75 : vector<128xf32> to vector<1x128xf32>
    %c23 = arith.constant 23 : index
    %c0_35 = arith.constant 0 : index
    %77 = vector.load %arg5[%c23, %c0_35] : memref<24x128xf32, #tpu.memory_space<vmem>>, vector<1x128xf32>
    %78 = vector.extract_strided_slice %9 {offsets = [2, 0], sizes = [1, 128], strides = [1, 1]} : vector<3x128xf32> to vector<1x128xf32>
    %79 = arith.mulf %77, %78 : vector<1x128xf32>
    %80 = arith.addf %79, %76 : vector<1x128xf32>
    %c2 = arith.constant 2 : index
    %c0_36 = arith.constant 0 : index
    %81 = vector.load %arg9[%c2, %c0_36] : memref<3x128xf32, #tpu.memory_space<vmem>>, vector<1x128xf32>
    tpu.vector_store %arg9[%c2, %c0_36], %80 {strides = array<i32>} : memref<3x128xf32, #tpu.memory_space<vmem>>, vector<1x128xf32>,
    %82 = vector.broadcast %3 : vector<1x128xf32> to vector<8x128xf32>
    %83 = arith.mulf %8, %82 : vector<8x128xf32>
    %84 = arith.addf %54, %83 : vector<8x128xf32>
    %85 = arith.negf %84 : vector<8x128xf32>
    %86 = math.exp %85 : vector<8x128xf32>
    %cst_37 = arith.constant 1.000000e+00 : f32
    %87 = vector.broadcast %cst_37 : f32 to vector<8x128xf32>
    %88 = arith.addf %87, %86 : vector<8x128xf32>
    %89 = arith.divf %87, %88 : vector<8x128xf32>
    %90 = arith.mulf %84, %89 : vector<8x128xf32>
    %c0_38 = arith.constant 0 : index
    %91 = arith.index_cast %5 : i32 to index
    %c0_39 = arith.constant 0 : index
    %92 = vector.load %arg8[%c0_38, %91, %c0_39] : memref<1x8x128xf32, #tpu.memory_space<vmem>>, vector<1x8x128xf32>
    %93 = vector.shape_cast %92 : vector<1x8x128xf32> to vector<8x128xf32>
    %94 = vector.shape_cast %90 : vector<8x128xf32> to vector<1x8x128xf32>
    tpu.vector_store %arg8[%c0_38, %91, %c0_39], %94 {strides = array<i32>} : memref<1x8x128xf32, #tpu.memory_space<vmem>>, vector<1x8x128xf32>,
    %c1_i32_40 = arith.constant 1 : i32
    return
  }
  func.func @transform_0(%arg0: i32, %arg1: i32, %arg2: i32) -> (i32, i32, i32) {
    %c0_i32 = arith.constant 0 : i32
    return %arg0, %arg2, %arg1 : i32, i32, i32
  }
  func.func @transform_1(%arg0: i32, %arg1: i32, %arg2: i32) -> (i32, i32) {
    %c0_i32 = arith.constant 0 : i32
    %c0_i32_0 = arith.constant 0 : i32
    return %c0_i32, %arg1 : i32, i32
  }
  func.func @transform_2(%arg0: i32, %arg1: i32, %arg2: i32) -> (i32, i32) {
    %c0_i32 = arith.constant 0 : i32
    %c0_i32_0 = arith.constant 0 : i32
    return %c0_i32, %arg1 : i32, i32
  }
  func.func @transform_3(%arg0: i32, %arg1: i32, %arg2: i32) -> (i32, i32) {
    %c0_i32 = arith.constant 0 : i32
    %c0_i32_0 = arith.constant 0 : i32
    return %c0_i32, %arg1 : i32, i32
  }
  func.func @transform_4(%arg0: i32, %arg1: i32, %arg2: i32) -> (i32, i32) {
    %c0_i32 = arith.constant 0 : i32
    %c0_i32_0 = arith.constant 0 : i32
    return %c0_i32, %arg1 : i32, i32
  }
  func.func @transform_5(%arg0: i32, %arg1: i32, %arg2: i32) -> (i32, i32, i32) {
    %c0_i32 = arith.constant 0 : i32
    return %arg0, %arg2, %arg1 : i32, i32, i32
  }
}

</mosaic_0001>

<llo_original>
// kernel: tpu_custom_call.1
$region0: #{tpu_custom_call.1}
  #allocation0 [shape = 'u32[]', space=smem, size = 0x4, offset = 0x4, fixed_abs, tag = 'smem constant byte address 0x4 - core index']
  #allocation1 [shape = 'u32[144,128]{1,0:T(1,128)}', space=vmem, size = 0x12000, scoped, tag = 'internal scratch']
  #allocation2 [shape = 'f32[3,128]{1,0:T(4,128)}', space=vmem, size = 0x800, scoped, tag = 'scratch operand']
  %s0 = inlined_call_operand.hbm [shape: f32[2,8,128], index: 0, kind: input, shape index: {}]
  %s1 = inlined_call_operand.hbm [shape: f32[64,128], index: 1, kind: input, shape index: {}]
  %s2 = inlined_call_operand.hbm [shape: f32[24,128], index: 2, kind: input, shape index: {}]
  %s3 = inlined_call_operand.hbm [shape: f32[24,128], index: 3, kind: input, shape index: {}]
  %s4 = inlined_call_operand.vmem [shape: f32[1,128], index: 4, kind: input, shape index: {}]
  %s5 = inlined_call_operand.hbm [shape: f32[2,8,128], index: 5, kind: output, shape index: {}]
  %s6 = sld [smem:[#allocation0]]
  $region73: #{tpu_custom_call.1} parent=0
    _
  %s8 = ssub.s32 1, %s6
  %s9 = scalar_select 0, %s8, %s6
  $region1: #{tpu_custom_call.1} parent=0
    #allocation3 [shape = 'u8[8192]{0}', space=vmem, size = 0x2000, scoped, tag = 'input window, operand 0']
    #allocation4 [shape = 's32[2]{0}', space=sflag, size = 0x8, scoped, tag = 'scoped memory for tpu_custom_call.1']
    #allocation5 [shape = 's32[2]{0}', space=sflag, size = 0x8, scoped, tag = 'scoped memory for tpu_custom_call.1']
    #allocation6 [shape = 'u8[32768]{0}', space=vmem, size = 0x8000, scoped, tag = 'input window, operand 1, single buffered']
    #allocation7 [shape = 's32[1]{0}', space=sflag, size = 0x4, scoped, tag = 'scoped memory for tpu_custom_call.1']
    #allocation8 [shape = 'u8[12288]{0}', space=vmem, size = 0x3000, scoped, tag = 'input window, operand 2, single buffered']
    #allocation9 [shape = 'u8[12288]{0}', space=vmem, size = 0x3000, scoped, tag = 'input window, operand 3, single buffered']
    #allocation10 [shape = 's32[1]{0}', space=sflag, size = 0x4, scoped, tag = 'scoped memory for tpu_custom_call.1']
    #allocation11 [shape = 'u8[8192]{0}', space=vmem, size = 0x2000, scoped, tag = 'output window, operand 0']
    %10 = vsyncpa [#allocation4], 0
    %s11 = scalar_lea.sflag [#allocation4], 1
    %12 = vsyncpa %s11, 0
    %13 = vsyncpa [#allocation7], 0
    %14 = vsyncpa [#allocation10], 0
    %15 = vsyncpa [#allocation5], 0
    %s16 = scalar_lea.sflag [#allocation5], 1
    %17 = vsyncpa %s16, 0
    loop: start=0, step=1, limit=4
    $region2: #{tpu_custom_call.1} parent=1 // loop_pre_header
      _
    $region3: #{tpu_custom_call.1} parent=1 // loop_header
      %s19 = sphi 0, %s23
      %p20 = scmp.ge.s32.totalorder %s19, 4
      %s26 = sphi 0, %s45
      %s27 = sphi 0, %s41
      %s28 = sphi 0, %s37
      %s29 = sphi 0, %s26
      %s30 = sphi 0, %s27
      %s31 = sphi 0, %s28
      %s32 = sphi 0, %s29
      %s33 = sphi 0, %s30
      %s34 = sphi 0, %s31
      %s52 = sphi 0, %s54
      %s55 = sphi 0, %s52
      %s56 = sphi 0, %s55
      %s72 = sphi 0, %s56
      %s78 = sphi 0, %s80
      %s81 = sphi 0, %s78
      %s82 = sphi 0, %s81
      %s98 = sphi 0, %s82
      %s104 = sphi 0, %s106
      %s107 = sphi 0, %s104
      %s108 = sphi 0, %s107
      %s124 = sphi 0, %s108
      %s130 = sphi 0, %s132
      %s133 = sphi 0, %s130
      %s134 = sphi 0, %s133
      %s150 = sphi 0, %s134
      %s156 = sphi 0, %s158
      %s159 = sphi 0, %s156
      %s160 = sphi 0, %s159
      %s176 = sphi 0, %s160
      %s186 = sphi 0, %s188
      %s189 = sphi 0, %s186
      %s190 = sphi 0, %s189
      %s206 = sphi 0, %s190
    $region4: #{tpu_custom_call.1} parent=1 // loop_header_branch
      %22 = sbr.rel (%p20) target = $region8
    $region5: #{tpu_custom_call.1} parent=1 // loop_body
      %s24 = ssub.s32 %s19, 1
      %s25 = ssub.s32 %s19, 2
      %s35 = sadd.s32 1, %s28
      %p36 = scmp.ge.s32.totalorder %s35, 1
      %s37 = scalar_select %p36, 0, %s35
      %s38 = sadd.s32 1, %s27
      %s39 = scalar_select %p36, %s38, %s27
      %p40 = scmp.ge.s32.totalorder %s39, 1
      %s41 = scalar_select %p40, 0, %s39
      %s42 = sadd.s32 1, %s26
      %s43 = scalar_select %p40, %s42, %s26
      %p44 = scmp.ge.s32.totalorder %s43, 2
      %s45 = scalar_select %p44, 0, %s43
      %s46 = ssub.s32 %s26, %s45
      %s47 = ssub.s32 %s28, %s37
      %s48 = sor.u32 %s46, %s47
      %s49 = ssub.s32 %s27, %s41
      %s50 = sor.u32 %s48, %s49
      %p51 = scmp.eq.s32.totalorder %s50, 0
      %s53 = sadd.s32 %s52, 1
      %s54 = scalar_select %p51, %s52, %s53
      %p57 = pneg %p51
      %p58 = scmp.eq.s32.totalorder %s19, 1
      %p59 = por %p57, %p58
      %p60 = scmp.ne.s32.totalorder %s52, %s55
      %p61 = scmp.eq.s32.totalorder %s19, 0
      %p62 = por %p60, %p61
      %p63 = scmp.ne.s32.totalorder %s52, %s55
      %p64 = scmp.eq.s32.totalorder %s24, 1
      %p65 = por %p63, %p64
      %p66 = scmp.ne.s32.totalorder %s55, %s56
      %p67 = scmp.eq.s32.totalorder %s24, 0
      %p68 = por %p66, %p67
      %p69 = scmp.ne.s32.totalorder %s55, %s56
      %p70 = scmp.eq.s32.totalorder %s25, 1
      %p71 = por %p69, %p70
      %p73 = scmp.ne.s32.totalorder %s56, %s72
      %p74 = scmp.eq.s32.totalorder %s25, 0
      %p75 = por %p73, %p74
      %s76 = ssub.s32 %s27, %s41
      %p77 = scmp.eq.s32.totalorder %s76, 0
      %s79 = sadd.s32 %s78, 1
      %s80 = scalar_select %p77, %s78, %s79
      %p83 = pneg %p77
      %p84 = scmp.eq.s32.totalorder %s19, 1
      %p85 = por %p83, %p84
      %p86 = scmp.ne.s32.totalorder %s78, %s81
      %p87 = scmp.eq.s32.totalorder %s19, 0
      %p88 = por %p86, %p87
      %p89 = scmp.ne.s32.totalorder %s78, %s81
      %p90 = scmp.eq.s32.totalorder %s24, 1
      %p91 = por %p89, %p90
      %p92 = scmp.ne.s32.totalorder %s81, %s82
      %p93 = scmp.eq.s32.totalorder %s24, 0
      %p94 = por %p92, %p93
      %p95 = scmp.ne.s32.totalorder %s81, %s82
      %p96 = scmp.eq.s32.totalorder %s25, 1
      %p97 = por %p95, %p96
      %p99 = scmp.ne.s32.totalorder %s82, %s98
      %p100 = scmp.eq.s32.totalorder %s25, 0
      %p101 = por %p99, %p100
      %s102 = ssub.s32 %s27, %s41
      %p103 = scmp.eq.s32.totalorder %s102, 0
      %s105 = sadd.s32 %s104, 1
      %s106 = scalar_select %p103, %s104, %s105
      %p109 = pneg %p103
      %p110 = scmp.eq.s32.totalorder %s19, 1
      %p111 = por %p109, %p110
      %p112 = scmp.ne.s32.totalorder %s104, %s107
      %p113 = scmp.eq.s32.totalorder %s19, 0
      %p114 = por %p112, %p113
      %p115 = scmp.ne.s32.totalorder %s104, %s107
      %p116 = scmp.eq.s32.totalorder %s24, 1
      %p117 = por %p115, %p116
      %p118 = scmp.ne.s32.totalorder %s107, %s108
      %p119 = scmp.eq.s32.totalorder %s24, 0
      %p120 = por %p118, %p119
      %p121 = scmp.ne.s32.totalorder %s107, %s108
      %p122 = scmp.eq.s32.totalorder %s25, 1
      %p123 = por %p121, %p122
      %p125 = scmp.ne.s32.totalorder %s108, %s124
      %p126 = scmp.eq.s32.totalorder %s25, 0
      %p127 = por %p125, %p126
      %s128 = ssub.s32 %s27, %s41
      %p129 = scmp.eq.s32.totalorder %s128, 0
      %s131 = sadd.s32 %s130, 1
      %s132 = scalar_select %p129, %s130, %s131
      %p135 = pneg %p129
      %p136 = scmp.eq.s32.totalorder %s19, 1
      %p137 = por %p135, %p136
      %p138 = scmp.ne.s32.totalorder %s130, %s133
      %p139 = scmp.eq.s32.totalorder %s19, 0
      %p140 = por %p138, %p139
      %p141 = scmp.ne.s32.totalorder %s130, %s133
      %p142 = scmp.eq.s32.totalorder %s24, 1
      %p143 = por %p141, %p142
      %p144 = scmp.ne.s32.totalorder %s133, %s134
      %p145 = scmp.eq.s32.totalorder %s24, 0
      %p146 = por %p144, %p145
      %p147 = scmp.ne.s32.totalorder %s133, %s134
      %p148 = scmp.eq.s32.totalorder %s25, 1
      %p149 = por %p147, %p148
      %p151 = scmp.ne.s32.totalorder %s134, %s150
      %p152 = scmp.eq.s32.totalorder %s25, 0
      %p153 = por %p151, %p152
      %s154 = ssub.s32 %s27, %s41
      %p155 = scmp.eq.s32.totalorder %s154, 0
      %s157 = sadd.s32 %s156, 1
      %s158 = scalar_select %p155, %s156, %s157
      %p161 = pneg %p155
      %p162 = scmp.eq.s32.totalorder %s19, 1
      %p163 = por %p161, %p162
      %p164 = scmp.ne.s32.totalorder %s156, %s159
      %p165 = scmp.eq.s32.totalorder %s19, 0
      %p166 = por %p164, %p165
      %p167 = scmp.ne.s32.totalorder %s156, %s159
      %p168 = scmp.eq.s32.totalorder %s24, 1
      %p169 = por %p167, %p168
      %p170 = scmp.ne.s32.totalorder %s159, %s160
      %p171 = scmp.eq.s32.totalorder %s24, 0
      %p172 = por %p170, %p171
      %p173 = scmp.ne.s32.totalorder %s159, %s160
      %p174 = scmp.eq.s32.totalorder %s25, 1
      %p175 = por %p173, %p174
      %p177 = scmp.ne.s32.totalorder %s160, %s176
      %p178 = scmp.eq.s32.totalorder %s25, 0
      %p179 = por %p177, %p178
      %s180 = ssub.s32 %s26, %s45
      %s181 = ssub.s32 %s28, %s37
      %s182 = sor.u32 %s180, %s181
      %s183 = ssub.s32 %s27, %s41
      %s184 = sor.u32 %s182, %s183
      %p185 = scmp.eq.s32.totalorder %s184, 0
      %s187 = sadd.s32 %s186, 1
      %s188 = scalar_select %p185, %s186, %s187
      %p191 = pneg %p185
      %p192 = scmp.eq.s32.totalorder %s19, 1
      %p193 = por %p191, %p192
      %p194 = scmp.ne.s32.totalorder %s186, %s189
      %p195 = scmp.eq.s32.totalorder %s19, 0
      %p196 = por %p194, %p195
      %p197 = scmp.ne.s32.totalorder %s186, %s189
      %p198 = scmp.eq.s32.totalorder %s24, 1
      %p199 = por %p197, %p198
      %p200 = scmp.ne.s32.totalorder %s189, %s190
      %p201 = scmp.eq.s32.totalorder %s24, 0
      %p202 = por %p200, %p201
      %p203 = scmp.ne.s32.totalorder %s189, %s190
      %p204 = scmp.eq.s32.totalorder %s25, 1
      %p205 = por %p203, %p204
      %p207 = scmp.ne.s32.totalorder %s190, %s206
      %p208 = scmp.eq.s32.totalorder %s25, 0
      %p209 = por %p207, %p208
      %p210 = scmp.le.s32.totalorder 1, %s19
      %p211 = scmp.lt.s32.totalorder %s19, 3
      %p212 = pnand %p210, %p211
      %p213 = pneg %p212
      // Predicated region
      $region9: #{tpu_custom_call.1} parent=5 // pred_check
        _
      $region10: #{tpu_custom_call.1} parent=5 // pred_check_branch
        %215 = sbr.rel (%p212) target = $region12
      $region11: #{tpu_custom_call.1} parent=5 // pred_region
        %s216 = ssub.s32 %s19, 1
        // Predicated region
        $region13: #{tpu_custom_call.1} parent=11 // pred_check
          %p217 = pneg %p94
        $region14: #{tpu_custom_call.1} parent=11 // pred_check_branch
          %219 = sbr.rel (%p217) target = $region16
        $region15: #{tpu_custom_call.1} parent=11 // pred_region
          %s221 = ssub.s32 1024, 1024
          %222 = vsyncadd [#allocation7], %s221
          %s223 = smul.addr %s30, 128
          %s224 = scalar_lea.hbm %s1, %s223
          %s225 = sshll.u32 [#allocation6], 4
          %s226 = int_to_ptr.vmem [resolvable:$true] %s225
          %231 = dma.hbm_to_vmem [thread:$0]  %s224, 1024, %s226, [#allocation7], 128, 128, 8
        $region16: #{tpu_custom_call.1} parent=11 // pred_fallthru
          _
        // Predicated region
        $region17: #{tpu_custom_call.1} parent=11 // pred_check
          %p232 = pneg %p120
        $region18: #{tpu_custom_call.1} parent=11 // pred_check_branch
          %234 = sbr.rel (%p232) target = $region20
        $region19: #{tpu_custom_call.1} parent=11 // pred_region
          %s236 = ssub.s32 384, 384
          %237 = vsyncadd [#allocation7], %s236
          %s238 = smul.addr %s30, 128
          %s239 = scalar_lea.hbm %s2, %s238
          %s240 = sshll.u32 [#allocation8], 4
          %s241 = int_to_ptr.vmem [resolvable:$true] %s240
          %246 = dma.hbm_to_vmem [thread:$0]  %s239, 384, %s241, [#allocation7], 128, 128, 8
        $region20: #{tpu_custom_call.1} parent=11 // pred_fallthru
          _
        // Predicated region
        $region21: #{tpu_custom_call.1} parent=11 // pred_check
          %p247 = pneg %p146
        $region22: #{tpu_custom_call.1} parent=11 // pred_check_branch
          %249 = sbr.rel (%p247) target = $region24
        $region23: #{tpu_custom_call.1} parent=11 // pred_region
          %s251 = ssub.s32 384, 384
          %252 = vsyncadd [#allocation10], %s251
          %s253 = smul.addr %s30, 128
          %s254 = scalar_lea.hbm %s3, %s253
          %s255 = sshll.u32 [#allocation9], 4
          %s256 = int_to_ptr.vmem [resolvable:$true] %s255
          %261 = dma.hbm_to_vmem [thread:$0]  %s254, 384, %s256, [#allocation10], 128, 128, 8
        $region24: #{tpu_custom_call.1} parent=11 // pred_fallthru
          _
        // Predicated region
        $region25: #{tpu_custom_call.1} parent=11 // pred_check
          %p262 = pneg %p172
        $region26: #{tpu_custom_call.1} parent=11 // pred_check_branch
          %264 = sbr.rel (%p262) target = $region28
        $region27: #{tpu_custom_call.1} parent=11 // pred_region
          %p265 = scmp.lt.s32.totalorder %s30, 0
          %s266 = scalar_select %p265, %s30, 0
          %s267 = scalar_lea.vmem %s4, %s266
        $region28: #{tpu_custom_call.1} parent=11 // pred_fallthru
          _
      $region12: #{tpu_custom_call.1} parent=5 // pred_fallthru
        _
      %p268 = scmp.lt.s32.totalorder %s19, 2
      // Predicated region
      $region29: #{tpu_custom_call.1} parent=5 // pred_check
        %p269 = pneg %p268
      $region30: #{tpu_custom_call.1} parent=5 // pred_check_branch
        %271 = sbr.rel (%p269) target = $region32
      $region31: #{tpu_custom_call.1} parent=5 // pred_region
        // Predicated region
        $region33: #{tpu_custom_call.1} parent=31 // pred_check
          %p272 = pneg %p62
        $region34: #{tpu_custom_call.1} parent=31 // pred_check_branch
          %274 = sbr.rel (%p272) target = $region36
        $region35: #{tpu_custom_call.1} parent=31 // pred_region
          %s275 = sand.u32 %s52, 1
          %s276 = scalar_lea.sflag [#allocation4], %s275
          %s277 = sand.u32 %s52, 1
          %s278 = smul.addr %s277, 8
          %s279 = scalar_lea.vmem [#allocation3], %s278
          %s281 = ssub.s32 128, 128
          %282 = vsyncadd %s276, %s281
          %s283 = sadd.s32 %s27, %s28
          %s284 = sadd.s32 %s283, %s26
          %s285 = smul.addr %s284, 128
          %s286 = scalar_lea.hbm %s0, %s285
          %s288 = sshll.u32 %s279, 4
          %s289 = int_to_ptr.vmem [resolvable:$true] %s288
          %291 = dma.hbm_to_vmem [thread:$0]  %s286, 128, %s289, %s276
        $region36: #{tpu_custom_call.1} parent=31 // pred_fallthru
          _
      $region32: #{tpu_custom_call.1} parent=5 // pred_fallthru
        _
      %p292 = scmp.le.s32.totalorder 1, %s19
      %p293 = scmp.lt.s32.totalorder %s19, 3
      %p294 = pnand %p292, %p293
      %p295 = pneg %p294
      // Predicated region
      $region37: #{tpu_custom_call.1} parent=5 // pred_check
        _
      $region38: #{tpu_custom_call.1} parent=5 // pred_check_branch
        %297 = sbr.rel (%p294) target = $region40
      $region39: #{tpu_custom_call.1} parent=5 // pred_region
        %s298 = ssub.s32 %s19, 1
        %s299 = sand.u32 %s55, 1
        %s300 = scalar_lea.sflag [#allocation4], %s299
        %s301 = sand.u32 %s55, 1
        %s302 = smul.addr %s301, 8
        %s303 = scalar_lea.vmem [#allocation3], %s302
        // Predicated region
        $region41: #{tpu_custom_call.1} parent=39 // pred_check
          %p304 = pneg %p68
        $region42: #{tpu_custom_call.1} parent=39 // pred_check_branch
          %306 = sbr.rel (%p304) target = $region44
        $region43: #{tpu_custom_call.1} parent=39 // pred_region
          %307 = dma.done %s300, 128
        $region44: #{tpu_custom_call.1} parent=39 // pred_fallthru
          _
        // Predicated region
        $region45: #{tpu_custom_call.1} parent=39 // pred_check
          %p308 = pneg %p94
        $region46: #{tpu_custom_call.1} parent=39 // pred_check_branch
          %310 = sbr.rel (%p308) target = $region48
        $region47: #{tpu_custom_call.1} parent=39 // pred_region
          %311 = dma.done [#allocation7], 1024
        $region48: #{tpu_custom_call.1} parent=39 // pred_fallthru
          _
        // Predicated region
        $region49: #{tpu_custom_call.1} parent=39 // pred_check
          %p312 = pneg %p120
        $region50: #{tpu_custom_call.1} parent=39 // pred_check_branch
          %314 = sbr.rel (%p312) target = $region52
        $region51: #{tpu_custom_call.1} parent=39 // pred_region
          %315 = dma.done [#allocation7], 384
        $region52: #{tpu_custom_call.1} parent=39 // pred_fallthru
          _
        // Predicated region
        $region53: #{tpu_custom_call.1} parent=39 // pred_check
          %p316 = pneg %p146
        $region54: #{tpu_custom_call.1} parent=39 // pred_check_branch
          %318 = sbr.rel (%p316) target = $region56
        $region55: #{tpu_custom_call.1} parent=39 // pred_region
          %319 = dma.done [#allocation10], 384
        $region56: #{tpu_custom_call.1} parent=39 // pred_fallthru
          _
        %s320 = sand.u32 %s55, 1
        %s321 = scalar_lea.sflag [#allocation4], %s320
        %s322 = sand.u32 %s55, 1
        %s323 = smul.addr %s322, 8
        %s324 = scalar_lea.vmem [#allocation3], %s323
        %p325 = pneg %p68
        %p326 = pneg %p65
        %p327 = pneg %p94
        %p328 = pneg %p91
        %p329 = pneg %p120
        %p330 = pneg %p117
        %p331 = pneg %p146
        %p332 = pneg %p143
        %p333 = scmp.lt.s32.totalorder %s30, 0
        %s334 = scalar_select %p333, %s30, 0
        %s335 = scalar_lea.vmem %s4, %s334
        %p336 = pneg %p172
        %p337 = pneg %p169
        %p338 = pneg %p202
        %p339 = pneg %p199
        %s340 = sand.u32 %s189, 1
        %s341 = scalar_lea.sflag [#allocation5], %s340
        %s342 = sand.u32 %s189, 1
        %s343 = smul.addr %s342, 8
        %s344 = scalar_lea.vmem [#allocation11], %s343
        %p345 = scmp.lt.s32.totalorder %s30, 0
        %s346 = scalar_select %p345, %s30, 0
        %s347 = scalar_lea.vmem %s4, %s346
        %p348 = scmp.eq.s32.totalorder %s31, 0
        // Predicated region
        $region57: #{tpu_custom_call.1} parent=39 // pred_check
          %p349 = pneg %p348
        $region58: #{tpu_custom_call.1} parent=39 // pred_check_branch
          %351 = sbr.rel (%p349) target = $region60
        $region59: #{tpu_custom_call.1} parent=39 // pred_region
          %352 = vst [vmem:[#allocation2] sm:$0x7] 0.0
        $region60: #{tpu_custom_call.1} parent=39 // pred_fallthru
          _
        %v353 = vld [vmem:[%s347] sm:$0x1]
        %v354 = vld [vmem:[%s303] sm:$0xff]
        %v355 = vld [vmem:[#allocation2] sm:$0x7]
        %v356 = vld [vmem:[#allocation8] sm:$0xff]
        %v357 = vlaneseq
        %v358 = vshrl.u32 %v357, 7
        %v359 = vsub.s32 0, %v358
        %v360 = vrot.slane %v355, %v359
        %v361 = vmul.f32 %v356, %v360
        %v362 = vld [vmem:[#allocation8 + $0x8] sm:$0xff]
        %v363 = vlaneseq
        %v364 = vshrl.u32 %v363, 7
        %v365 = vsub.s32 1, %v364
        %v366 = vrot.slane %v355, %v365
        %v367 = vmul.f32 %v362, %v366
        %v368 = vadd.f32 %v361, %v367
        %v369 = vld [vmem:[#allocation8 + $0x10] sm:$0xff]
        %v370 = vlaneseq
        %v371 = vshrl.u32 %v370, 7
        %v372 = vsub.s32 2, %v371
        %v373 = vrot.slane %v355, %v372
        %v374 = vmul.f32 %v369, %v373
        %v375 = vadd.f32 %v368, %v374
        %v376 = vld [vmem:[#allocation6] sm:$0xff]
        %v377 = vmul.f32 %v376, %v354
        %v378 = vadd.f32 %v375, %v377
        %v379 = vrot.slane %v354, 7
        %v380 = vld [vmem:[#allocation6 + $0x8] sm:$0xff]
        %v381 = vmul.f32 %v380, %v379
        %v382 = vadd.f32 %v378, %v381
        %v383 = vrot.slane %v354, 6
        %v384 = vld [vmem:[#allocation6 + $0x10] sm:$0xff]
        %v385 = vmul.f32 %v384, %v383
        %v386 = vadd.f32 %v382, %v385
        %v387 = vrot.slane %v354, 5
        %v388 = vld [vmem:[#allocation6 + $0x18] sm:$0xff]
        %v389 = vmul.f32 %v388, %v387
        %v390 = vadd.f32 %v386, %v389
        %v391 = vrot.slane %v354, 4
        %v392 = vld [vmem:[#allocation6 + $0x20] sm:$0xff]
        %v393 = vmul.f32 %v392, %v391
        %v394 = vadd.f32 %v390, %v393
        %v395 = vrot.slane %v354, 3
        %v396 = vld [vmem:[#allocation6 + $0x28] sm:$0xff]
        %v397 = vmul.f32 %v396, %v395
        %v398 = vadd.f32 %v394, %v397
        %v399 = vrot.slane %v354, 2
        %v400 = vld [vmem:[#allocation6 + $0x30] sm:$0xff]
        %v401 = vmul.f32 %v400, %v399
        %v402 = vadd.f32 %v398, %v401
        %v403 = vrot.slane %v354, 1
        %v404 = vld [vmem:[#allocation6 + $0x38] sm:$0xff]
        %v405 = vmul.f32 %v404, %v403
        %v406 = vadd.f32 %v402, %v405
        %v407 = vld [vmem:[#allocation9] sm:$0xff]
        %v408 = vmul.f32 %v407, %v354
        %v409 = vrot.slane %v408, 4
        %v410 = vadd.f32 %v408, %v409
        %v411 = vrot.slane %v410, 2
        %v412 = vadd.f32 %v410, %v411
        %v413 = vrot.slane %v412, 1
        %v414 = vadd.f32 %v412, %v413
        %v415 = vld [vmem:[#allocation8 + $0x7] sm:$0x1]
        %v416 = vmul.f32 %v415, %v355
        %v417 = vadd.f32 %v416, %v414
        %418 = vst [vmem:[#allocation2] sm:$0x1] %v417
        %v419 = vld [vmem:[#allocation9 + $0x8] sm:$0xff]
        %v420 = vmul.f32 %v419, %v354
        %v421 = vrot.slane %v420, 4
        %v422 = vadd.f32 %v420, %v421
        %v423 = vrot.slane %v422, 2
        %v424 = vadd.f32 %v422, %v423
        %v425 = vrot.slane %v424, 1
        %v426 = vadd.f32 %v424, %v425
        %v427 = vld [vmem:[#allocation8 + $0xf] sm:$0x1]
        %v429 = vrot.slane %v355, 1
        %v431 = vmul.f32 %v427, %v429
        %v432 = vadd.f32 %v431, %v426
        %433 = vst [vmem:[#allocation2 + $0x1] sm:$0x1] %v432
        %v434 = vld [vmem:[#allocation9 + $0x10] sm:$0xff]
        %v435 = vmul.f32 %v434, %v354
        %v436 = vrot.slane %v435, 4
        %v437 = vadd.f32 %v435, %v436
        %v438 = vrot.slane %v437, 2
        %v439 = vadd.f32 %v437, %v438
        %v440 = vrot.slane %v439, 1
        %v441 = vadd.f32 %v439, %v440
        %v442 = vld [vmem:[#allocation8 + $0x17] sm:$0x1]
        %v443 = vrot.slane %v355, 2
        %v445 = vmul.f32 %v442, %v443
        %v446 = vadd.f32 %v445, %v441
        %447 = vst [vmem:[#allocation2 + $0x2] sm:$0x1] %v446
        %v449 = vlaneseq
        %v450 = vshrl.u32 %v449, 7
        %v451 = vsub.s32 0, %v450
        %v452 = vrot.slane %v353, %v451
        %v454 = vmul.f32 %v354, %v452
        %v455 = vadd.f32 %v406, %v454
        %v456 = vxor.u32 %v455, 2147483648
        %v457 = vmul.f32 %v456, 1.442695
        %v458 = vpow.pop %v457
        %v459 = vadd.f32 %v458, 1.0
        %v460 = vrcp.pop %v459
        %v461 = vmul.f32 1.0, %v460
        %v462 = vmul.f32 %v455, %v461
        %463 = vst [vmem:[%s344] sm:$0xff] %v462
        %s464 = sand.u32 %s189, 1
        %s465 = scalar_lea.sflag [#allocation5], %s464
        %s466 = sand.u32 %s189, 1
        %s467 = smul.addr %s466, 8
        %s468 = scalar_lea.vmem [#allocation11], %s467
        // Predicated region
        $region61: #{tpu_custom_call.1} parent=39 // pred_check
          %p469 = pneg %p199
        $region62: #{tpu_custom_call.1} parent=39 // pred_check_branch
          %471 = sbr.rel (%p469) target = $region64
        $region63: #{tpu_custom_call.1} parent=39 // pred_region
          %s473 = ssub.s32 128, 128
          %474 = vsyncadd %s465, %s473
          %s475 = sadd.s32 %s30, %s31
          %s476 = sadd.s32 %s475, %s29
          %s477 = smul.addr %s476, 128
          %s478 = scalar_lea.hbm %s5, %s477
          %s480 = sshll.u32 %s468, 4
          %s481 = int_to_ptr.vmem [resolvable:$true] %s480
          %483 = dma.vmem_to_hbm [thread:$0]  %s481, 128, %s478, %s465
        $region64: #{tpu_custom_call.1} parent=39 // pred_fallthru
          _
      $region40: #{tpu_custom_call.1} parent=5 // pred_fallthru
        _
      %p484 = scmp.le.s32.totalorder 2, %s19
      // Predicated region
      $region65: #{tpu_custom_call.1} parent=5 // pred_check
        %p485 = pneg %p484
      $region66: #{tpu_custom_call.1} parent=5 // pred_check_branch
        %487 = sbr.rel (%p485) target = $region68
      $region67: #{tpu_custom_call.1} parent=5 // pred_region
        %s488 = ssub.s32 %s19, 2
        // Predicated region
        $region69: #{tpu_custom_call.1} parent=67 // pred_check
          %p489 = pneg %p205
        $region70: #{tpu_custom_call.1} parent=67 // pred_check_branch
          %491 = sbr.rel (%p489) target = $region72
        $region71: #{tpu_custom_call.1} parent=67 // pred_region
          %s492 = sand.u32 %s190, 1
          %s493 = scalar_lea.sflag [#allocation5], %s492
          %s494 = sand.u32 %s190, 1
          %s495 = smul.addr %s494, 8
          %s496 = scalar_lea.vmem [#allocation11], %s495
          %497 = dma.done %s493, 128
        $region72: #{tpu_custom_call.1} parent=67 // pred_fallthru
          _
      $region68: #{tpu_custom_call.1} parent=5 // pred_fallthru
        _
    $region6: #{tpu_custom_call.1} parent=1 // loop_footer
      %s23 = sadd.s32 1, %s19
    $region7: #{tpu_custom_call.1} parent=1 // loop_footer_branch
      %18 = sbr.rel target = $region3
    $region8: #{tpu_custom_call.1} parent=1 // loop_exit
      _
    %498 = vsyncpa [#allocation4], 1
    %s499 = scalar_lea.sflag [#allocation4], 1
    %500 = vsyncpa %s499, 1
    %501 = vsyncpa [#allocation7], 1
    %502 = vsyncpa [#allocation10], 1
    %503 = vsyncpa [#allocation5], 1
    %s504 = scalar_lea.sflag [#allocation5], 1
    %505 = vsyncpa %s504, 1

</llo_original>
